<compile_context>
chip_gen: v7x
topology: tpu7x:2x2x1
jax: 0.10.0
libtpu: 0.0.40
codegen_flags: <defaults>
</compile_context>

<pallas_src>
import math

import jax
import jax.numpy as jnp
from jax.experimental import pallas as pl
from jax.experimental.pallas import tpu as pltpu

_INV_SQRT2 = 1.0 / math.sqrt(2.0)


def _gelu_kernel(x_ref, o_ref):
    x = x_ref[...].astype(jnp.float32)
    # erf via Abramowitz & Stegun 7.1.26 (|abs err| <= 1.5e-7).
    a = jnp.abs(x) * _INV_SQRT2                 # a = |x| / sqrt(2) >= 0
    d = 1.0 + 0.3275911 * a
    t = pl.reciprocal(d, approx=True)           # EUP vrcp (free VLIW slot)
    t = t * (2.0 - d * t)                       # one Newton step -> ~f32 accurate
    poly = t * (0.254829592 + t * (-0.284496736 + t * (1.421413741
                + t * (-1.453152027 + t * 1.061405429))))
    erf_abs = 1.0 - poly * jnp.exp(-(a * a))    # = erf(|x| / sqrt(2))
    # x * erf(x/sqrt(2)) == |x| * erf_abs == sqrt(2) * a * erf_abs, so
    #   gelu(x) = 0.5*x*(1 + erf) = 0.5*x + (1/sqrt(2)) * a * erf_abs
    # (no sign/select chain, one fewer add).
    o_ref[...] = (0.5 * x + _INV_SQRT2 * (a * erf_abs)).astype(o_ref.dtype)


def _round_up(n, m):
    return ((n + m - 1) // m) * m


def _pick_tile_rows(rows, cap):
    """Largest multiple-of-8 tile <= cap, preferring exact divisors of rows."""
    cap = max(8, cap - cap % 8)
    if rows <= cap:
        return rows                              # single full-extent block
    tr = cap
    lo = max(8, cap // 2)
    while tr >= lo:
        if rows % tr == 0:
            return tr
        tr -= 8
    return cap                                   # ragged last block (masked store)


def _gelu_2d(x2, *, max_block_bytes=2 << 20, min_block_bytes=512 << 10,
             desired_tiles=8):
    """Run the kernel over a lane-dense [rows, c] slab (c % 128 == 0)."""
    rows, c = x2.shape
    itemsize = jnp.dtype(x2.dtype).itemsize
    max_rows = max(8, (max_block_bytes // (c * itemsize)) // 8 * 8)
    min_rows = max(8, (min_block_bytes // (c * itemsize)) // 8 * 8)
    # Aim for >= desired_tiles grid steps (megacore split on v7x) but keep the
    # block past the ~0.5-2 MiB roofline knee.
    cap = min(max_rows, max(min_rows, _round_up(pl.cdiv(rows, desired_tiles), 8)))
    tr = _pick_tile_rows(rows, cap)
    grid = (pl.cdiv(rows, tr),)

    block_bytes = tr * c * itemsize
    vmem_limit = int(min(32 << 20, max(16 << 20, 4 * block_bytes + (4 << 20))))

    return pl.pallas_call(
        _gelu_kernel,
        out_shape=jax.ShapeDtypeStruct((rows, c), x2.dtype),
        grid_spec=pltpu.PrefetchScalarGridSpec(
            num_scalar_prefetch=0,
            grid=grid,
            in_specs=[pl.BlockSpec((tr, c), lambda i: (i, 0))],
            out_specs=pl.BlockSpec((tr, c), lambda i: (i, 0)),
        ),
        compiler_params=pltpu.CompilerParams(
            dimension_semantics=("parallel",),
            vmem_limit_bytes=vmem_limit,
        ),
    )(x2)


def _gelu_exact_jnp(x):
    """Plain-XLA exact GeLU (used only for tiny ragged tails / reference)."""
    x32 = x.astype(jnp.float32)
    y = x32 * 0.5 * (1.0 + jax.scipy.special.erf(x32 * _INV_SQRT2))
    return y.astype(x.dtype)


def gelu(x):
    """Exact GeLU: x * 0.5 * (1 + erf(x / sqrt(2))). Same shape/dtype as x."""
    orig_shape = x.shape
    n = x.size
    if n == 0:
        return x

    # Fast path: zero-copy reshape to a lane-dense [rows, c] slab. Any input
    # whose last dim is a multiple of 128 (hidden = 1024, 4096, ...) lands
    # here automatically, with no padding and no extra HBM traffic.
    for c in (1024, 512, 256, 128):
        if n % c == 0:
            return _gelu_2d(x.reshape(n // c, c)).reshape(orig_shape)

    # Ragged fallback: kernel on the 128-aligned prefix, tiny jnp tail.
    # TODO(synk): the final concatenate still rewrites the output once; a
    # scalar-prefetched masked last tile would remove it for ragged sizes.
    x_flat = x.reshape(-1)
    c = 128
    n_main = (n // c) * c
    if n_main == 0:
        return _gelu_exact_jnp(x)
    main = _gelu_2d(x_flat[:n_main].reshape(n_main // c, c)).reshape(-1)
    tail = _gelu_exact_jnp(x_flat[n_main:])
    return jnp.concatenate([main, tail]).reshape(orig_shape)


if __name__ == "__main__":
    key = jax.random.PRNGKey(0)

    # Shapes consistent with the module's usage (transformer activations).
    batch, seq, hidden = 2, 8, 32
    x = 2.0 * jax.random.normal(key, (batch, seq, hidden), dtype=jnp.float32)
    out = jax.block_until_ready(gelu(x))
    ref = _gelu_exact_jnp(x)
    assert out.shape == x.shape and out.dtype == x.dtype
    assert jnp.allclose(out, ref, atol=1e-5, rtol=1e-5), "mismatch (aligned path)"

    # Multi-tile, lane-dense path (exercises the 1-D parallel grid).
    xb = jax.random.normal(jax.random.PRNGKey(1), (4, 128, 512), dtype=jnp.float32)
    outb = jax.block_until_ready(gelu(xb))
    assert jnp.allclose(outb, _gelu_exact_jnp(xb), atol=1e-5, rtol=1e-5), \
        "mismatch (multi-tile path)"

    # Ragged path (prefix kernel + tiny jnp tail).
    xr = jax.random.normal(jax.random.PRNGKey(2), (3, 7, 11), dtype=jnp.float32)
    outr = jax.block_until_ready(gelu(xr))
    assert outr.shape == xr.shape and outr.dtype == xr.dtype
    assert jnp.allclose(outr, _gelu_exact_jnp(xr), atol=1e-5, rtol=1e-5), \
        "mismatch (ragged path)"

    print("KERNEL_OK")
</pallas_src>

<mosaic_0001>
module attributes {stable_mosaic.version = 11 : i64} {
  func.func @_gelu_kernel(%arg0: i32, %arg1: memref<1x512xf32, #tpu.memory_space<vmem>>, %arg2: memref<1x512xf32, #tpu.memory_space<vmem>>) attributes {dimension_semantics = [#tpu.dimension_semantics<parallel>], iteration_bounds = array<i64: 1>, scalar_prefetch = 0 : i64, scratch_operands = 0 : i64, tpu.core_type = #tpu.core_type<tc>, window_params = [{transform_indices = @transform_0, window_bounds = array<i64: 1, 512>}, {transform_indices = @transform_1, window_bounds = array<i64: 1, 512>}]} {
    %c0 = arith.constant 0 : index
    %c0_0 = arith.constant 0 : index
    %0 = vector.load %arg1[%c0, %c0_0] : memref<1x512xf32, #tpu.memory_space<vmem>>, vector<1x512xf32>
    %1 = math.absf %0 : vector<1x512xf32>
    %cst = arith.constant 0.707106769 : f32
    %2 = vector.broadcast %cst : f32 to vector<1x512xf32>
    %3 = arith.mulf %1, %2 : vector<1x512xf32>
    %cst_1 = arith.constant 0.327591091 : f32
    %4 = vector.broadcast %cst_1 : f32 to vector<1x512xf32>
    %5 = arith.mulf %4, %3 : vector<1x512xf32>
    %cst_2 = arith.constant 1.000000e+00 : f32
    %6 = vector.broadcast %cst_2 : f32 to vector<1x512xf32>
    %7 = arith.addf %6, %5 : vector<1x512xf32>
    %8 = tpu.reciprocal %7 {approx = true} : vector<1x512xf32> -> vector<1x512xf32>
    %9 = arith.mulf %7, %8 : vector<1x512xf32>
    %cst_3 = arith.constant 2.000000e+00 : f32
    %10 = vector.broadcast %cst_3 : f32 to vector<1x512xf32>
    %11 = arith.subf %10, %9 : vector<1x512xf32>
    %12 = arith.mulf %8, %11 : vector<1x512xf32>
    %cst_4 = arith.constant 1.06140542 : f32
    %13 = vector.broadcast %cst_4 : f32 to vector<1x512xf32>
    %14 = arith.mulf %12, %13 : vector<1x512xf32>
    %cst_5 = arith.constant -1.45315206 : f32
    %15 = vector.broadcast %cst_5 : f32 to vector<1x512xf32>
    %16 = arith.addf %15, %14 : vector<1x512xf32>
    %17 = arith.mulf %12, %16 : vector<1x512xf32>
    %cst_6 = arith.constant 1.42141378 : f32
    %18 = vector.broadcast %cst_6 : f32 to vector<1x512xf32>
    %19 = arith.addf %18, %17 : vector<1x512xf32>
    %20 = arith.mulf %12, %19 : vector<1x512xf32>
    %cst_7 = arith.constant -0.284496725 : f32
    %21 = vector.broadcast %cst_7 : f32 to vector<1x512xf32>
    %22 = arith.addf %21, %20 : vector<1x512xf32>
    %23 = arith.mulf %12, %22 : vector<1x512xf32>
    %cst_8 = arith.constant 0.254829586 : f32
    %24 = vector.broadcast %cst_8 : f32 to vector<1x512xf32>
    %25 = arith.addf %24, %23 : vector<1x512xf32>
    %26 = arith.mulf %12, %25 : vector<1x512xf32>
    %27 = arith.mulf %3, %3 : vector<1x512xf32>
    %cst_9 = arith.constant 0.000000e+00 : f32
    %28 = vector.broadcast %cst_9 : f32 to vector<1x512xf32>
    %29 = arith.subf %28, %27 : vector<1x512xf32>
    %30 = math.exp %29 : vector<1x512xf32>
    %31 = arith.mulf %26, %30 : vector<1x512xf32>
    %cst_10 = arith.constant 1.000000e+00 : f32
    %32 = vector.broadcast %cst_10 : f32 to vector<1x512xf32>
    %33 = arith.subf %32, %31 : vector<1x512xf32>
    %cst_11 = arith.constant 5.000000e-01 : f32
    %34 = vector.broadcast %cst_11 : f32 to vector<1x512xf32>
    %35 = arith.mulf %34, %0 : vector<1x512xf32>
    %36 = arith.mulf %3, %33 : vector<1x512xf32>
    %cst_12 = arith.constant 0.707106769 : f32
    %37 = vector.broadcast %cst_12 : f32 to vector<1x512xf32>
    %38 = arith.mulf %37, %36 : vector<1x512xf32>
    %39 = arith.addf %35, %38 : vector<1x512xf32>
    %c0_13 = arith.constant 0 : index
    %c0_14 = arith.constant 0 : index
    %40 = vector.load %arg2[%c0_13, %c0_14] : memref<1x512xf32, #tpu.memory_space<vmem>>, vector<1x512xf32>
    tpu.vector_store %arg2[%c0_13, %c0_14], %39 {strides = array<i32>} : memref<1x512xf32, #tpu.memory_space<vmem>>, vector<1x512xf32>,
    return
  }
  func.func @transform_0(%arg0: i32) -> (i32, i32) {
    %c0_i32 = arith.constant 0 : i32
    %c0_i32_0 = arith.constant 0 : i32
    return %arg0, %c0_i32 : i32, i32
  }
  func.func @transform_1(%arg0: i32) -> (i32, i32) {
    %c0_i32 = arith.constant 0 : i32
    %c0_i32_0 = arith.constant 0 : i32
    return %arg0, %c0_i32 : i32, i32
  }
}

</mosaic_0001>

<llo_original>
// kernel: tpu_custom_call.1
$region0: #{tpu_custom_call.1}
  #allocation0 [shape = 'u32[]', space=smem, size = 0x4, offset = 0x4, fixed_abs, tag = 'smem constant byte address 0x4 - core index']
  #allocation1 [shape = 'u32[144,128]{1,0:T(1,128)}', space=vmem, size = 0x12000, scoped, tag = 'internal scratch']
  %s0 = inlined_call_operand.hbm [shape: f32[1,512], index: 0, kind: input, shape index: {}]
  %s1 = inlined_call_operand.hbm [shape: f32[1,512], index: 1, kind: output, shape index: {}]
  %s2 = sld [smem:[#allocation0]]
  $region18: #{tpu_custom_call.1} parent=0
    _
  %s4 = ssub.s32 1, %s2
  %s5 = scalar_select 0, %s4, %s2
  $region1: #{tpu_custom_call.1} parent=0
    #allocation2 [shape = 'u8[2048]{0}', space=vmem, size = 0x800, scoped, tag = 'input window, operand 0, single buffered']
    #allocation3 [shape = 's32[1]{0}', space=sflag, size = 0x4, scoped, tag = 'scoped memory for tpu_custom_call.1']
    #allocation4 [shape = 's32[1]{0}', space=sflag, size = 0x4, scoped, tag = 'scoped memory for tpu_custom_call.1']
    #allocation5 [shape = 'u8[2048]{0}', space=vmem, size = 0x800, scoped, tag = 'output window, operand 0, single buffered']
    %6 = vsyncpa [#allocation3], 0
    %7 = vsyncpa [#allocation4], 0
    // Predicated region
    $region2: #{tpu_custom_call.1} parent=1 // pred_check
      _
    $region3: #{tpu_custom_call.1} parent=1 // pred_check_branch
      %9 = sbr.rel (0) target = $region5
    $region4: #{tpu_custom_call.1} parent=1 // pred_region
      %s11 = ssub.s32 64, 64
      %12 = vsyncadd [#allocation3], %s11
      %s14 = sshll.u32 [#allocation2], 4
      %s15 = int_to_ptr.vmem [resolvable:$true] %s14
      %17 = dma.hbm_to_vmem [thread:$0]  %s0, 64, %s15, [#allocation3]
    $region5: #{tpu_custom_call.1} parent=1 // pred_fallthru
      _
    // Predicated region
    $region6: #{tpu_custom_call.1} parent=1 // pred_check
      _
    $region7: #{tpu_custom_call.1} parent=1 // pred_check_branch
      %19 = sbr.rel (0) target = $region9
    $region8: #{tpu_custom_call.1} parent=1 // pred_region
      %20 = dma.done [#allocation3], 64
    $region9: #{tpu_custom_call.1} parent=1 // pred_fallthru
      _
    %v21 = vld [vmem:[#allocation2] sm:$0xf]
    %v22 = vand.u32 2147483647, %v21
    %v23 = vmul.f32 %v22, 0.70710677
    %v24 = vmul.f32 %v23, 0.3275911
    %v25 = vadd.f32 %v24, 1.0
    %v26 = vrcp.pop %v25
    %v27 = vmul.f32 %v25, %v26
    %v28 = vsub.f32 2.0, %v27
    %v29 = vmul.f32 %v26, %v28
    %v30 = vmul.f32 %v29, 1.0614054
    %v31 = vadd.f32 %v30, -1.4531521
    %v32 = vmul.f32 %v29, %v31
    %v33 = vadd.f32 %v32, 1.4214138
    %v34 = vmul.f32 %v29, %v33
    %v35 = vadd.f32 %v34, -0.28449672
    %v36 = vmul.f32 %v29, %v35
    %v37 = vadd.f32 %v36, 0.2548296
    %v38 = vmul.f32 %v29, %v37
    %v39 = vmul.f32 %v23, %v23
    %v40 = vsub.f32 0.0, %v39
    %v41 = vmul.f32 %v40, 1.442695
    %v42 = vpow.pop %v41
    %v43 = vmul.f32 %v38, %v42
    %v44 = vsub.f32 1.0, %v43
    %v45 = vmul.f32 %v21, 0.5
    %v46 = vmul.f32 %v23, %v44
    %v47 = vmul.f32 %v46, 0.70710677
    %v48 = vadd.f32 %v45, %v47
    %v49 = vlaneseq
    %vm50 = vcmp.ge.s32.totalorder %v49, 0
    %vm51 = vcmp.lt.s32.totalorder %v49, 512
    %vm52 = vmand %vm50, %vm51
    %53 = vst.msk [vmem:[#allocation5] sm:$0xf] %vm52, %v48
    // Predicated region
    $region10: #{tpu_custom_call.1} parent=1 // pred_check
      _
    $region11: #{tpu_custom_call.1} parent=1 // pred_check_branch
      %55 = sbr.rel (0) target = $region13
    $region12: #{tpu_custom_call.1} parent=1 // pred_region
      %s57 = ssub.s32 64, 64
      %58 = vsyncadd [#allocation4], %s57
      %s60 = sshll.u32 [#allocation5], 4
      %s61 = int_to_ptr.vmem [resolvable:$true] %s60
      %63 = dma.vmem_to_hbm [thread:$0]  %s61, 64, %s1, [#allocation4]
    $region13: #{tpu_custom_call.1} parent=1 // pred_fallthru
      _
    // Predicated region
    $region14: #{tpu_custom_call.1} parent=1 // pred_check
      _
    $region15: #{tpu_custom_call.1} parent=1 // pred_check_branch
      %65 = sbr.rel (0) target = $region17
    $region16: #{tpu_custom_call.1} parent=1 // pred_region
      %66 = dma.done [#allocation4], 64
    $region17: #{tpu_custom_call.1} parent=1 // pred_fallthru
      _
    %67 = vsyncpa [#allocation3], 1
    %68 = vsyncpa [#allocation4], 1

</llo_original>
